<compile_context>
chip_gen: v7x
topology: tpu7x:2x2x1
jax: 0.10.0
libtpu: 0.0.40
codegen_flags: <defaults>
</compile_context>

<pallas_src>
import jax
import jax.numpy as jnp
from jax import lax
from jax.experimental import pallas as pl
from jax.experimental.pallas import tpu as pltpu


def aan_kernel(x_ref, wix_ref, wia_ref, wfx_ref, wfa_ref, bi_ref, bf_ref,
               gate_ref, avg_ref, tril_ref, carry_ref):
    # x_ref: (TQ, D); wi*/wf*: (D, D); bi/bf: (1, D)
    # tril_ref: (TQ, TQ) VMEM scratch; carry_ref: (1, D) VMEM scratch (running sum).
    q = pl.program_id(1)
    TQ = tril_ref.shape[0]

    @pl.when(q == 0)
    def _init():
        r = lax.broadcasted_iota(jnp.int32, (TQ, TQ), 0)
        c = lax.broadcasted_iota(jnp.int32, (TQ, TQ), 1)
        tril_ref[...] = jnp.where(c <= r, 1.0, 0.0).astype(jnp.float32)
        carry_ref[...] = jnp.zeros_like(carry_ref)

    x = x_ref[...].astype(jnp.float32)                                   # (TQ, D)

    # Blockwise cumulative sum: local prefix sums via tril-ones matmul + carry.
    cum = jnp.dot(tril_ref[...], x, preferred_element_type=jnp.float32)  # (TQ, D)
    total = cum + carry_ref[...]                                         # (TQ, D)
    carry_ref[...] = total[TQ - 1:TQ, :]                                 # sum of rows <= end of tile

    # 1/(global_row + 1) applied to the (TQ, D) output (exact f32 divide, tiny).
    row = lax.broadcasted_iota(jnp.int32, (TQ, 1), 0) + q * TQ + 1       # (TQ, 1)
    avg = total * (1.0 / row.astype(jnp.float32))                        # (TQ, D)

    # Gating linear split per gate and per operand -> lane-dense (TQ, D) results.
    ig = (jnp.dot(x, wix_ref[...], preferred_element_type=jnp.float32)
          + jnp.dot(avg, wia_ref[...], preferred_element_type=jnp.float32)
          + bi_ref[...])
    fg = (jnp.dot(x, wfx_ref[...], preferred_element_type=jnp.float32)
          + jnp.dot(avg, wfa_ref[...], preferred_element_type=jnp.float32)
          + bf_ref[...])
    gate = jax.nn.sigmoid(ig) * x + jax.nn.sigmoid(fg) * avg

    gate_ref[...] = gate.astype(gate_ref.dtype)
    avg_ref[...] = avg.astype(avg_ref.dtype)


def _pick_tile(t_len):
    for tq in (512, 256, 128, 64, 32, 16, 8):
        if t_len % tq == 0:
            return tq
    return t_len  # full-length block (always a legal block shape)


def average_attention(layer_in, weight, bias, tq=None):
    """layer_in: (B, T, D) f32.  weight: (2D, 2D) nn.Linear layout (out, in).  bias: (2D,)."""
    B, T, D = layer_in.shape
    assert weight.shape == (2 * D, 2 * D) and bias.shape == (2 * D,)

    if tq is None:
        tq = _pick_tile(T)
    assert T % tq == 0 and (tq % 8 == 0 or tq == T), "tq must divide T and be 8-aligned"
    n_q = T // tq

    # y = cat(x, avg) @ W.T + b, split per output gate and per operand so the kernel
    # never slices a (TQ, 2D) value at column D (non-lane-aligned unless D % 128 == 0).
    wi_x = jnp.transpose(weight[:D, :D])    # (D, D): x   -> input gate
    wi_a = jnp.transpose(weight[:D, D:])    # (D, D): avg -> input gate
    wf_x = jnp.transpose(weight[D:, :D])    # (D, D): x   -> forget gate
    wf_a = jnp.transpose(weight[D:, D:])    # (D, D): avg -> forget gate
    bi = bias[:D].reshape(1, D)
    bf = bias[D:].reshape(1, D)

    # VMEM budget: double-buffered x tile + 2 double-buffered output tiles,
    # 4 (D, D) weight blocks (default 2-deep), biases, tril + carry scratch.
    tile_bytes = tq * D * 4
    w_bytes = 4 * D * D * 4
    est = (2 * tile_bytes + 2 * 2 * tile_bytes + 2 * w_bytes
           + 4 * D * 4 + tq * tq * 4 + D * 4)
    vmem_limit = int(min(max(3 * est, 16 << 20), 64 << 20))

    gating_out, average_out = pl.pallas_call(
        aan_kernel,
        out_shape=(jax.ShapeDtypeStruct((B, T, D), layer_in.dtype),
                   jax.ShapeDtypeStruct((B, T, D), layer_in.dtype)),
        grid_spec=pltpu.PrefetchScalarGridSpec(
            num_scalar_prefetch=0,
            grid=(B, n_q),
            in_specs=[
                pl.BlockSpec((None, tq, D), lambda b, q: (b, q, 0)),   # x tile
                pl.BlockSpec((D, D), lambda b, q: (0, 0)),             # wi_x
                pl.BlockSpec((D, D), lambda b, q: (0, 0)),             # wi_a
                pl.BlockSpec((D, D), lambda b, q: (0, 0)),             # wf_x
                pl.BlockSpec((D, D), lambda b, q: (0, 0)),             # wf_a
                pl.BlockSpec((1, D), lambda b, q: (0, 0)),             # bi
                pl.BlockSpec((1, D), lambda b, q: (0, 0)),             # bf
            ],
            out_specs=[
                pl.BlockSpec((None, tq, D), lambda b, q: (b, q, 0)),   # gating_out
                pl.BlockSpec((None, tq, D), lambda b, q: (b, q, 0)),   # average_out
            ],
            scratch_shapes=[
                pltpu.VMEM((tq, tq), jnp.float32),   # tril-ones block (built at q == 0)
                pltpu.VMEM((1, D), jnp.float32),     # running-sum carry across q tiles
            ],
        ),
        compiler_params=pltpu.CompilerParams(
            dimension_semantics=("parallel", "arbitrary"),
            vmem_limit_bytes=vmem_limit),
    )(layer_in, wi_x, wi_a, wf_x, wf_a, bi, bf)
    return gating_out, average_out


def _reference(layer_in, weight, bias):
    B, T, D = layer_in.shape
    tri = jnp.tril(jnp.ones((T, T), jnp.float32))
    w = (jnp.ones((1, T), jnp.float32) / jnp.arange(1, T + 1, dtype=jnp.float32))
    mask = tri * w.T
    mask = jnp.broadcast_to(mask[None], (B, T, T))
    avg = jnp.matmul(mask, layer_in)
    cat = jnp.concatenate([layer_in, avg], axis=-1)
    gl = cat @ weight.T + bias
    ig, fg = gl[..., :D], gl[..., D:]
    gate = jax.nn.sigmoid(ig) * layer_in + jax.nn.sigmoid(fg) * avg
    return gate, avg


if __name__ == "__main__":
    # D is a multiple of 128 so output stores are lane-dense.
    B, T, D = 2, 32, 128
    key = jax.random.PRNGKey(0)
    kx, kw, kb = jax.random.split(key, 3)

    layer_in = jax.random.normal(kx, (B, T, D), jnp.float32)
    # Deterministic nn.Linear-style init: uniform(-1/sqrt(in), 1/sqrt(in)), in = 2*D.
    bound = 1.0 / jnp.sqrt(2.0 * D)
    weight = jax.random.uniform(kw, (2 * D, 2 * D), jnp.float32, -bound, bound)
    bias = jax.random.uniform(kb, (2 * D,), jnp.float32, -bound, bound)

    ref_gate, ref_avg = _reference(layer_in, weight, bias)

    # tq=8 -> 4 sequence tiles per batch element: exercises the carry / q==0 reset path.
    gating_out, average_out = average_attention(layer_in, weight, bias, tq=8)
    jax.block_until_ready((gating_out, average_out))
    assert jnp.allclose(average_out, ref_avg, atol=1e-5, rtol=1e-5)
    assert jnp.allclose(gating_out, ref_gate, atol=1e-5, rtol=1e-5)

    # Auto-picked tile (single tile covering T) must also match.
    g2, a2 = average_attention(layer_in, weight, bias)
    jax.block_until_ready((g2, a2))
    assert jnp.allclose(a2, ref_avg, atol=1e-5, rtol=1e-5)
    assert jnp.allclose(g2, ref_gate, atol=1e-5, rtol=1e-5)

    print("KERNEL_OK")
</pallas_src>

<mosaic_0001>
module attributes {stable_mosaic.version = 11 : i64} {
  func.func @aan_kernel(%arg0: i32, %arg1: i32, %arg2: memref<1x8x128xf32, #tpu.memory_space<vmem>>, %arg3: memref<128x128xf32, #tpu.memory_space<vmem>>, %arg4: memref<128x128xf32, #tpu.memory_space<vmem>>, %arg5: memref<128x128xf32, #tpu.memory_space<vmem>>, %arg6: memref<128x128xf32, #tpu.memory_space<vmem>>, %arg7: memref<1x128xf32, #tpu.memory_space<vmem>>, %arg8: memref<1x128xf32, #tpu.memory_space<vmem>>, %arg9: memref<1x8x128xf32, #tpu.memory_space<vmem>>, %arg10: memref<1x8x128xf32, #tpu.memory_space<vmem>>, %arg11: memref<8x8xf32, #tpu.memory_space<vmem>>, %arg12: memref<1x128xf32, #tpu.memory_space<vmem>>) attributes {dimension_semantics = [#tpu.dimension_semantics<parallel>, #tpu.dimension_semantics<arbitrary>], iteration_bounds = array<i64: 2, 4>, scalar_prefetch = 0 : i64, scratch_operands = 2 : i64, tpu.core_type = #tpu.core_type<tc>, window_params = [{transform_indices = @transform_0, window_bounds = array<i64: 1, 8, 128>}, {pipeline_mode = #tpu.pipeline_mode<synchronous>, transform_indices = @transform_1, window_bounds = array<i64: 128, 128>}, {pipeline_mode = #tpu.pipeline_mode<synchronous>, transform_indices = @transform_2, window_bounds = array<i64: 128, 128>}, {pipeline_mode = #tpu.pipeline_mode<synchronous>, transform_indices = @transform_3, window_bounds = array<i64: 128, 128>}, {pipeline_mode = #tpu.pipeline_mode<synchronous>, transform_indices = @transform_4, window_bounds = array<i64: 128, 128>}, {pipeline_mode = #tpu.pipeline_mode<synchronous>, transform_indices = @transform_5, window_bounds = array<i64: 1, 128>}, {pipeline_mode = #tpu.pipeline_mode<synchronous>, transform_indices = @transform_6, window_bounds = array<i64: 1, 128>}, {transform_indices = @transform_7, window_bounds = array<i64: 1, 8, 128>}, {transform_indices = @transform_8, window_bounds = array<i64: 1, 8, 128>}]} {
    %c0_i32 = arith.constant 0 : i32
    %0 = arith.cmpi eq, %arg1, %c0_i32 : i32
    %1 = arith.extui %0 : i1 to i32
    %c0_i32_0 = arith.constant 0 : i32
    %2 = arith.cmpi ne, %1, %c0_i32_0 : i32
    scf.if %2 {
      %58 = tpu.iota {dimensions = array<i32: 0>} : vector<8x8xi32>
      %59 = tpu.iota {dimensions = array<i32: 1>} : vector<8x8xi32>
      %60 = arith.cmpi sle, %59, %58 : vector<8x8xi32>
      %cst_34 = arith.constant 1.000000e+00 : f32
      %cst_35 = arith.constant 0.000000e+00 : f32
      %61 = vector.broadcast %cst_34 : f32 to vector<8x8xf32>
      %62 = vector.broadcast %cst_35 : f32 to vector<8x8xf32>
      %63 = arith.select %60, %61, %62 : vector<8x8xi1>, vector<8x8xf32>
      %c0_36 = arith.constant 0 : index
      %c0_37 = arith.constant 0 : index
      %64 = vector.load %arg11[%c0_36, %c0_37] : memref<8x8xf32, #tpu.memory_space<vmem>>, vector<8x8xf32>
      tpu.vector_store %arg11[%c0_36, %c0_37], %63 {strides = array<i32>} : memref<8x8xf32, #tpu.memory_space<vmem>>, vector<8x8xf32>,
      %cst_38 = arith.constant 0.000000e+00 : f32
      %65 = vector.broadcast %cst_38 : f32 to vector<1x128xf32>
      %c0_39 = arith.constant 0 : index
      %c0_40 = arith.constant 0 : index
      %66 = vector.load %arg12[%c0_39, %c0_40] : memref<1x128xf32, #tpu.memory_space<vmem>>, vector<1x128xf32>
      tpu.vector_store %arg12[%c0_39, %c0_40], %65 {strides = array<i32>} : memref<1x128xf32, #tpu.memory_space<vmem>>, vector<1x128xf32>,
    } else {
    }
    %c0 = arith.constant 0 : index
    %c0_1 = arith.constant 0 : index
    %c0_2 = arith.constant 0 : index
    %3 = vector.load %arg2[%c0, %c0_1, %c0_2] : memref<1x8x128xf32, #tpu.memory_space<vmem>>, vector<1x8x128xf32>
    %4 = vector.shape_cast %3 : vector<1x8x128xf32> to vector<8x128xf32>
    %c0_3 = arith.constant 0 : index
    %c0_4 = arith.constant 0 : index
    %5 = vector.load %arg11[%c0_3, %c0_4] : memref<8x8xf32, #tpu.memory_space<vmem>>, vector<8x8xf32>
    %cst = arith.constant dense<0.000000e+00> : vector<8x128xf32>
    %6 = tpu.matmul %5, %4, %cst {dimension_numbers = #tpu.dot_dimension_numbers<[1], [0], [0], [1], [0, 0, 1, 1], [], []>} : vector<8x8xf32>, vector<8x128xf32>, vector<8x128xf32> -> vector<8x128xf32>
    %c0_5 = arith.constant 0 : index
    %c0_6 = arith.constant 0 : index
    %7 = vector.load %arg12[%c0_5, %c0_6] : memref<1x128xf32, #tpu.memory_space<vmem>>, vector<1x128xf32>
    %8 = vector.broadcast %7 : vector<1x128xf32> to vector<8x128xf32>
    %9 = arith.addf %6, %8 : vector<8x128xf32>
    %10 = vector.extract_strided_slice %9 {offsets = [7, 0], sizes = [1, 128], strides = [1, 1]} : vector<8x128xf32> to vector<1x128xf32>
    %c0_7 = arith.constant 0 : index
    %c0_8 = arith.constant 0 : index
    %11 = vector.load %arg12[%c0_7, %c0_8] : memref<1x128xf32, #tpu.memory_space<vmem>>, vector<1x128xf32>
    tpu.vector_store %arg12[%c0_7, %c0_8], %10 {strides = array<i32>} : memref<1x128xf32, #tpu.memory_space<vmem>>, vector<1x128xf32>,
    %12 = tpu.iota {dimensions = array<i32: 0>} : vector<8x1xi32>
    %c8_i32 = arith.constant 8 : i32
    %13 = arith.muli %arg1, %c8_i32 : i32
    %14 = vector.broadcast %13 : i32 to vector<8x1xi32>
    %15 = arith.addi %12, %14 : vector<8x1xi32>
    %c1_i32 = arith.constant 1 : i32
    %16 = vector.broadcast %c1_i32 : i32 to vector<8x1xi32>
    %17 = arith.addi %15, %16 : vector<8x1xi32>
    %18 = arith.sitofp %17 : vector<8x1xi32> to vector<8x1xf32>
    %cst_9 = arith.constant 1.000000e+00 : f32
    %19 = vector.broadcast %cst_9 : f32 to vector<8x1xf32>
    %20 = arith.divf %19, %18 : vector<8x1xf32>
    %21 = vector.broadcast %20 : vector<8x1xf32> to vector<8x128xf32>
    %22 = arith.mulf %9, %21 : vector<8x128xf32>
    %c0_10 = arith.constant 0 : index
    %c0_11 = arith.constant 0 : index
    %23 = vector.load %arg3[%c0_10, %c0_11] : memref<128x128xf32, #tpu.memory_space<vmem>>, vector<128x128xf32>
    %cst_12 = arith.constant dense<0.000000e+00> : vector<8x128xf32>
    %24 = tpu.matmul %4, %23, %cst_12 {dimension_numbers = #tpu.dot_dimension_numbers<[1], [0], [0], [1], [0, 0, 1, 1], [], []>} : vector<8x128xf32>, vector<128x128xf32>, vector<8x128xf32> -> vector<8x128xf32>
    %c0_13 = arith.constant 0 : index
    %c0_14 = arith.constant 0 : index
    %25 = vector.load %arg4[%c0_13, %c0_14] : memref<128x128xf32, #tpu.memory_space<vmem>>, vector<128x128xf32>
    %cst_15 = arith.constant dense<0.000000e+00> : vector<8x128xf32>
    %26 = tpu.matmul %22, %25, %cst_15 {dimension_numbers = #tpu.dot_dimension_numbers<[1], [0], [0], [1], [0, 0, 1, 1], [], []>} : vector<8x128xf32>, vector<128x128xf32>, vector<8x128xf32> -> vector<8x128xf32>
    %27 = arith.addf %24, %26 : vector<8x128xf32>
    %c0_16 = arith.constant 0 : index
    %c0_17 = arith.constant 0 : index
    %28 = vector.load %arg7[%c0_16, %c0_17] : memref<1x128xf32, #tpu.memory_space<vmem>>, vector<1x128xf32>
    %29 = vector.broadcast %28 : vector<1x128xf32> to vector<8x128xf32>
    %30 = arith.addf %27, %29 : vector<8x128xf32>
    %c0_18 = arith.constant 0 : index
    %c0_19 = arith.constant 0 : index
    %31 = vector.load %arg5[%c0_18, %c0_19] : memref<128x128xf32, #tpu.memory_space<vmem>>, vector<128x128xf32>
    %cst_20 = arith.constant dense<0.000000e+00> : vector<8x128xf32>
    %32 = tpu.matmul %4, %31, %cst_20 {dimension_numbers = #tpu.dot_dimension_numbers<[1], [0], [0], [1], [0, 0, 1, 1], [], []>} : vector<8x128xf32>, vector<128x128xf32>, vector<8x128xf32> -> vector<8x128xf32>
    %c0_21 = arith.constant 0 : index
    %c0_22 = arith.constant 0 : index
    %33 = vector.load %arg6[%c0_21, %c0_22] : memref<128x128xf32, #tpu.memory_space<vmem>>, vector<128x128xf32>
    %cst_23 = arith.constant dense<0.000000e+00> : vector<8x128xf32>
    %34 = tpu.matmul %22, %33, %cst_23 {dimension_numbers = #tpu.dot_dimension_numbers<[1], [0], [0], [1], [0, 0, 1, 1], [], []>} : vector<8x128xf32>, vector<128x128xf32>, vector<8x128xf32> -> vector<8x128xf32>
    %35 = arith.addf %32, %34 : vector<8x128xf32>
    %c0_24 = arith.constant 0 : index
    %c0_25 = arith.constant 0 : index
    %36 = vector.load %arg8[%c0_24, %c0_25] : memref<1x128xf32, #tpu.memory_space<vmem>>, vector<1x128xf32>
    %37 = vector.broadcast %36 : vector<1x128xf32> to vector<8x128xf32>
    %38 = arith.addf %35, %37 : vector<8x128xf32>
    %39 = arith.negf %30 : vector<8x128xf32>
    %40 = math.exp %39 : vector<8x128xf32>
    %cst_26 = arith.constant 1.000000e+00 : f32
    %41 = vector.broadcast %cst_26 : f32 to vector<8x128xf32>
    %42 = arith.addf %41, %40 : vector<8x128xf32>
    %43 = arith.divf %41, %42 : vector<8x128xf32>
    %44 = arith.mulf %43, %4 : vector<8x128xf32>
    %45 = arith.negf %38 : vector<8x128xf32>
    %46 = math.exp %45 : vector<8x128xf32>
    %cst_27 = arith.constant 1.000000e+00 : f32
    %47 = vector.broadcast %cst_27 : f32 to vector<8x128xf32>
    %48 = arith.addf %47, %46 : vector<8x128xf32>
    %49 = arith.divf %47, %48 : vector<8x128xf32>
    %50 = arith.mulf %49, %22 : vector<8x128xf32>
    %51 = arith.addf %44, %50 : vector<8x128xf32>
    %c0_28 = arith.constant 0 : index
    %c0_29 = arith.constant 0 : index
    %c0_30 = arith.constant 0 : index
    %52 = vector.load %arg9[%c0_28, %c0_29, %c0_30] : memref<1x8x128xf32, #tpu.memory_space<vmem>>, vector<1x8x128xf32>
    %53 = vector.shape_cast %52 : vector<1x8x128xf32> to vector<8x128xf32>
    %54 = vector.shape_cast %51 : vector<8x128xf32> to vector<1x8x128xf32>
    tpu.vector_store %arg9[%c0_28, %c0_29, %c0_30], %54 {strides = array<i32>} : memref<1x8x128xf32, #tpu.memory_space<vmem>>, vector<1x8x128xf32>,
    %c0_31 = arith.constant 0 : index
    %c0_32 = arith.constant 0 : index
    %c0_33 = arith.constant 0 : index
    %55 = vector.load %arg10[%c0_31, %c0_32, %c0_33] : memref<1x8x128xf32, #tpu.memory_space<vmem>>, vector<1x8x128xf32>
    %56 = vector.shape_cast %55 : vector<1x8x128xf32> to vector<8x128xf32>
    %57 = vector.shape_cast %22 : vector<8x128xf32> to vector<1x8x128xf32>
    tpu.vector_store %arg10[%c0_31, %c0_32, %c0_33], %57 {strides = array<i32>} : memref<1x8x128xf32, #tpu.memory_space<vmem>>, vector<1x8x128xf32>,
    return
  }
  func.func @transform_0(%arg0: i32, %arg1: i32) -> (i32, i32, i32) {
    %c0_i32 = arith.constant 0 : i32
    %c0_i32_0 = arith.constant 0 : i32
    return %arg0, %arg1, %c0_i32 : i32, i32, i32
  }
  func.func @transform_1(%arg0: i32, %arg1: i32) -> (i32, i32) {
    %c0_i32 = arith.constant 0 : i32
    %c0_i32_0 = arith.constant 0 : i32
    %c0_i32_1 = arith.constant 0 : i32
    return %c0_i32, %c0_i32_0 : i32, i32
  }
  func.func @transform_2(%arg0: i32, %arg1: i32) -> (i32, i32) {
    %c0_i32 = arith.constant 0 : i32
    %c0_i32_0 = arith.constant 0 : i32
    %c0_i32_1 = arith.constant 0 : i32
    return %c0_i32, %c0_i32_0 : i32, i32
  }
  func.func @transform_3(%arg0: i32, %arg1: i32) -> (i32, i32) {
    %c0_i32 = arith.constant 0 : i32
    %c0_i32_0 = arith.constant 0 : i32
    %c0_i32_1 = arith.constant 0 : i32
    return %c0_i32, %c0_i32_0 : i32, i32
  }
  func.func @transform_4(%arg0: i32, %arg1: i32) -> (i32, i32) {
    %c0_i32 = arith.constant 0 : i32
    %c0_i32_0 = arith.constant 0 : i32
    %c0_i32_1 = arith.constant 0 : i32
    return %c0_i32, %c0_i32_0 : i32, i32
  }
  func.func @transform_5(%arg0: i32, %arg1: i32) -> (i32, i32) {
    %c0_i32 = arith.constant 0 : i32
    %c0_i32_0 = arith.constant 0 : i32
    %c0_i32_1 = arith.constant 0 : i32
    return %c0_i32, %c0_i32_0 : i32, i32
  }
  func.func @transform_6(%arg0: i32, %arg1: i32) -> (i32, i32) {
    %c0_i32 = arith.constant 0 : i32
    %c0_i32_0 = arith.constant 0 : i32
    %c0_i32_1 = arith.constant 0 : i32
    return %c0_i32, %c0_i32_0 : i32, i32
  }
  func.func @transform_7(%arg0: i32, %arg1: i32) -> (i32, i32, i32) {
    %c0_i32 = arith.constant 0 : i32
    %c0_i32_0 = arith.constant 0 : i32
    return %arg0, %arg1, %c0_i32 : i32, i32, i32
  }
  func.func @transform_8(%arg0: i32, %arg1: i32) -> (i32, i32, i32) {
    %c0_i32 = arith.constant 0 : i32
    %c0_i32_0 = arith.constant 0 : i32
    return %arg0, %arg1, %c0_i32 : i32, i32, i32
  }
}

</mosaic_0001>

<llo_original>
// kernel: tpu_custom_call.1
$region0: #{tpu_custom_call.1}
  #allocation0 [shape = 'u32[]', space=smem, size = 0x4, offset = 0x4, fixed_abs, tag = 'smem constant byte address 0x4 - core index']
  #allocation1 [shape = 'u32[144,128]{1,0:T(1,128)}', space=vmem, size = 0x12000, scoped, tag = 'internal scratch']
  #allocation2 [shape = 'f32[8,8]{1,0:T(8,128)}', space=vmem, size = 0x1000, scoped, tag = 'scratch operand']
  #allocation3 [shape = 'f32[1,128]{1,0:T(1,128)}', space=vmem, size = 0x200, scoped, tag = 'scratch operand']
  %s0 = inlined_call_operand.hbm [shape: f32[2,32,128], index: 0, kind: input, shape index: {}]
  %s1 = inlined_call_operand.hbm [shape: f32[128,128], index: 1, kind: input, shape index: {}]
  %s2 = inlined_call_operand.hbm [shape: f32[128,128], index: 2, kind: input, shape index: {}]
  %s3 = inlined_call_operand.hbm [shape: f32[128,128], index: 3, kind: input, shape index: {}]
  %s4 = inlined_call_operand.hbm [shape: f32[128,128], index: 4, kind: input, shape index: {}]
  %s5 = inlined_call_operand.vmem [shape: f32[1,128], index: 5, kind: input, shape index: {}]
  %s6 = inlined_call_operand.vmem [shape: f32[1,128], index: 6, kind: input, shape index: {}]
  %s7 = inlined_call_operand.hbm [shape: f32[2,32,128], index: 7, kind: output, shape index: {0}]
  %s8 = inlined_call_operand.hbm [shape: f32[2,32,128], index: 8, kind: output, shape index: {1}]
  %9 = xla_tuple %s7, %s8
  %s10 = sld [smem:[#allocation0]]
  $region93: #{tpu_custom_call.1} parent=0
    _
  %s12 = ssub.s32 1, %s10
  %s13 = scalar_select 0, %s12, %s10
  $region1: #{tpu_custom_call.1} parent=0
    #allocation4 [shape = 'u8[8192]{0}', space=vmem, size = 0x2000, scoped, tag = 'input window, operand 0']
    #allocation5 [shape = 's32[2]{0}', space=sflag, size = 0x8, scoped, tag = 'scoped memory for tpu_custom_call.1']
    #allocation6 [shape = 's32[2]{0}', space=sflag, size = 0x8, scoped, tag = 'scoped memory for tpu_custom_call.1']
    #allocation7 [shape = 'u8[65536]{0}', space=vmem, size = 0x10000, scoped, tag = 'input window, operand 1, single buffered']
    #allocation8 [shape = 's32[1]{0}', space=sflag, size = 0x4, scoped, tag = 'scoped memory for tpu_custom_call.1']
    #allocation9 [shape = 'u8[65536]{0}', space=vmem, size = 0x10000, scoped, tag = 'input window, operand 2, single buffered']
    #allocation10 [shape = 'u8[65536]{0}', space=vmem, size = 0x10000, scoped, tag = 'input window, operand 3, single buffered']
    #allocation11 [shape = 's32[1]{0}', space=sflag, size = 0x4, scoped, tag = 'scoped memory for tpu_custom_call.1']
    #allocation12 [shape = 'u8[65536]{0}', space=vmem, size = 0x10000, scoped, tag = 'input window, operand 4, single buffered']
    #allocation13 [shape = 'u8[8192]{0}', space=vmem, size = 0x2000, scoped, tag = 'output window, operand 0']
    #allocation14 [shape = 'u8[8192]{0}', space=vmem, size = 0x2000, scoped, tag = 'output window, operand 1']
    #allocation15 [shape = 's32[2]{0}', space=sflag, size = 0x8, scoped, tag = 'scoped memory for tpu_custom_call.1']
    %14 = vsyncpa [#allocation5], 0
    %s15 = scalar_lea.sflag [#allocation5], 1
    %16 = vsyncpa %s15, 0
    %17 = vsyncpa [#allocation8], 0
    %18 = vsyncpa [#allocation11], 0
    %19 = vsyncpa [#allocation6], 0
    %s20 = scalar_lea.sflag [#allocation6], 1
    %21 = vsyncpa %s20, 0
    %22 = vsyncpa [#allocation15], 0
    %s23 = scalar_lea.sflag [#allocation15], 1
    %24 = vsyncpa %s23, 0
    loop: start=0, step=1, limit=10
    $region2: #{tpu_custom_call.1} parent=1 // loop_pre_header
      _
    $region3: #{tpu_custom_call.1} parent=1 // loop_header
      %s26 = sphi 0, %s30
      %p27 = scmp.ge.s32.totalorder %s26, 10
      %s33 = sphi 0, %s45
      %s34 = sphi 0, %s41
      %s35 = sphi 0, %s33
      %s36 = sphi 0, %s34
      %s37 = sphi 0, %s35
      %s38 = sphi 0, %s36
      %s50 = sphi 0, %s52
      %s53 = sphi 0, %s50
      %s54 = sphi 0, %s53
      %s70 = sphi 0, %s54
      %s74 = sphi 0, %s74
      %s76 = sphi 0, %s74
      %s77 = sphi 0, %s76
      %s91 = sphi 0, %s77
      %s95 = sphi 0, %s95
      %s97 = sphi 0, %s95
      %s98 = sphi 0, %s97
      %s112 = sphi 0, %s98
      %s116 = sphi 0, %s116
      %s118 = sphi 0, %s116
      %s119 = sphi 0, %s118
      %s133 = sphi 0, %s119
      %s137 = sphi 0, %s137
      %s139 = sphi 0, %s137
      %s140 = sphi 0, %s139
      %s154 = sphi 0, %s140
      %s158 = sphi 0, %s158
      %s160 = sphi 0, %s158
      %s161 = sphi 0, %s160
      %s175 = sphi 0, %s161
      %s179 = sphi 0, %s179
      %s181 = sphi 0, %s179
      %s182 = sphi 0, %s181
      %s196 = sphi 0, %s182
      %s204 = sphi 0, %s206
      %s207 = sphi 0, %s204
      %s208 = sphi 0, %s207
      %s224 = sphi 0, %s208
      %s232 = sphi 0, %s234
      %s235 = sphi 0, %s232
      %s236 = sphi 0, %s235
      %s252 = sphi 0, %s236
    $region4: #{tpu_custom_call.1} parent=1 // loop_header_branch
      %29 = sbr.rel (%p27) target = $region8
    $region5: #{tpu_custom_call.1} parent=1 // loop_body
      %s31 = ssub.s32 %s26, 1
      %s32 = ssub.s32 %s26, 2
      %s39 = sadd.s32 1, %s34
      %p40 = scmp.ge.s32.totalorder %s39, 4
      %s41 = scalar_select %p40, 0, %s39
      %s42 = sadd.s32 1, %s33
      %s43 = scalar_select %p40, %s42, %s33
      %p44 = scmp.ge.s32.totalorder %s43, 2
      %s45 = scalar_select %p44, 0, %s43
      %s46 = ssub.s32 %s33, %s45
      %s47 = ssub.s32 %s34, %s41
      %s48 = sor.u32 %s46, %s47
      %p49 = scmp.eq.s32.totalorder %s48, 0
      %s51 = sadd.s32 %s50, 1
      %s52 = scalar_select %p49, %s50, %s51
      %p55 = pneg %p49
      %p56 = scmp.eq.s32.totalorder %s26, 7
      %p57 = por %p55, %p56
      %p58 = scmp.ne.s32.totalorder %s50, %s53
      %p59 = scmp.eq.s32.totalorder %s26, 0
      %p60 = por %p58, %p59
      %p61 = scmp.ne.s32.totalorder %s50, %s53
      %p62 = scmp.eq.s32.totalorder %s31, 7
      %p63 = por %p61, %p62
      %p64 = scmp.ne.s32.totalorder %s53, %s54
      %p65 = scmp.eq.s32.totalorder %s31, 0
      %p66 = por %p64, %p65
      %p67 = scmp.ne.s32.totalorder %s53, %s54
      %p68 = scmp.eq.s32.totalorder %s32, 7
      %p69 = por %p67, %p68
      %p71 = scmp.ne.s32.totalorder %s54, %s70
      %p72 = scmp.eq.s32.totalorder %s32, 0
      %p73 = por %p71, %p72
      %s75 = sadd.s32 %s74, 1
      %p78 = scmp.eq.s32.totalorder %s26, 7
      %p79 = scmp.ne.s32.totalorder %s74, %s76
      %p80 = scmp.eq.s32.totalorder %s26, 0
      %p81 = por %p79, %p80
      %p82 = scmp.ne.s32.totalorder %s74, %s76
      %p83 = scmp.eq.s32.totalorder %s31, 7
      %p84 = por %p82, %p83
      %p85 = scmp.ne.s32.totalorder %s76, %s77
      %p86 = scmp.eq.s32.totalorder %s31, 0
      %p87 = por %p85, %p86
      %p88 = scmp.ne.s32.totalorder %s76, %s77
      %p89 = scmp.eq.s32.totalorder %s32, 7
      %p90 = por %p88, %p89
      %p92 = scmp.ne.s32.totalorder %s77, %s91
      %p93 = scmp.eq.s32.totalorder %s32, 0
      %p94 = por %p92, %p93
      %s96 = sadd.s32 %s95, 1
      %p99 = scmp.eq.s32.totalorder %s26, 7
      %p100 = scmp.ne.s32.totalorder %s95, %s97
      %p101 = scmp.eq.s32.totalorder %s26, 0
      %p102 = por %p100, %p101
      %p103 = scmp.ne.s32.totalorder %s95, %s97
      %p104 = scmp.eq.s32.totalorder %s31, 7
      %p105 = por %p103, %p104
      %p106 = scmp.ne.s32.totalorder %s97, %s98
      %p107 = scmp.eq.s32.totalorder %s31, 0
      %p108 = por %p106, %p107
      %p109 = scmp.ne.s32.totalorder %s97, %s98
      %p110 = scmp.eq.s32.totalorder %s32, 7
      %p111 = por %p109, %p110
      %p113 = scmp.ne.s32.totalorder %s98, %s112
      %p114 = scmp.eq.s32.totalorder %s32, 0
      %p115 = por %p113, %p114
      %s117 = sadd.s32 %s116, 1
      %p120 = scmp.eq.s32.totalorder %s26, 7
      %p121 = scmp.ne.s32.totalorder %s116, %s118
      %p122 = scmp.eq.s32.totalorder %s26, 0
      %p123 = por %p121, %p122
      %p124 = scmp.ne.s32.totalorder %s116, %s118
      %p125 = scmp.eq.s32.totalorder %s31, 7
      %p126 = por %p124, %p125
      %p127 = scmp.ne.s32.totalorder %s118, %s119
      %p128 = scmp.eq.s32.totalorder %s31, 0
      %p129 = por %p127, %p128
      %p130 = scmp.ne.s32.totalorder %s118, %s119
      %p131 = scmp.eq.s32.totalorder %s32, 7
      %p132 = por %p130, %p131
      %p134 = scmp.ne.s32.totalorder %s119, %s133
      %p135 = scmp.eq.s32.totalorder %s32, 0
      %p136 = por %p134, %p135
      %s138 = sadd.s32 %s137, 1
      %p141 = scmp.eq.s32.totalorder %s26, 7
      %p142 = scmp.ne.s32.totalorder %s137, %s139
      %p143 = scmp.eq.s32.totalorder %s26, 0
      %p144 = por %p142, %p143
      %p145 = scmp.ne.s32.totalorder %s137, %s139
      %p146 = scmp.eq.s32.totalorder %s31, 7
      %p147 = por %p145, %p146
      %p148 = scmp.ne.s32.totalorder %s139, %s140
      %p149 = scmp.eq.s32.totalorder %s31, 0
      %p150 = por %p148, %p149
      %p151 = scmp.ne.s32.totalorder %s139, %s140
      %p152 = scmp.eq.s32.totalorder %s32, 7
      %p153 = por %p151, %p152
      %p155 = scmp.ne.s32.totalorder %s140, %s154
      %p156 = scmp.eq.s32.totalorder %s32, 0
      %p157 = por %p155, %p156
      %s159 = sadd.s32 %s158, 1
      %p162 = scmp.eq.s32.totalorder %s26, 7
      %p163 = scmp.ne.s32.totalorder %s158, %s160
      %p164 = scmp.eq.s32.totalorder %s26, 0
      %p165 = por %p163, %p164
      %p166 = scmp.ne.s32.totalorder %s158, %s160
      %p167 = scmp.eq.s32.totalorder %s31, 7
      %p168 = por %p166, %p167
      %p169 = scmp.ne.s32.totalorder %s160, %s161
      %p170 = scmp.eq.s32.totalorder %s31, 0
      %p171 = por %p169, %p170
      %p172 = scmp.ne.s32.totalorder %s160, %s161
      %p173 = scmp.eq.s32.totalorder %s32, 7
      %p174 = por %p172, %p173
      %p176 = scmp.ne.s32.totalorder %s161, %s175
      %p177 = scmp.eq.s32.totalorder %s32, 0
      %p178 = por %p176, %p177
      %s180 = sadd.s32 %s179, 1
      %p183 = scmp.eq.s32.totalorder %s26, 7
      %p184 = scmp.ne.s32.totalorder %s179, %s181
      %p185 = scmp.eq.s32.totalorder %s26, 0
      %p186 = por %p184, %p185
      %p187 = scmp.ne.s32.totalorder %s179, %s181
      %p188 = scmp.eq.s32.totalorder %s31, 7
      %p189 = por %p187, %p188
      %p190 = scmp.ne.s32.totalorder %s181, %s182
      %p191 = scmp.eq.s32.totalorder %s31, 0
      %p192 = por %p190, %p191
      %p193 = scmp.ne.s32.totalorder %s181, %s182
      %p194 = scmp.eq.s32.totalorder %s32, 7
      %p195 = por %p193, %p194
      %p197 = scmp.ne.s32.totalorder %s182, %s196
      %p198 = scmp.eq.s32.totalorder %s32, 0
      %p199 = por %p197, %p198
      %s200 = ssub.s32 %s33, %s45
      %s201 = ssub.s32 %s34, %s41
      %s202 = sor.u32 %s200, %s201
      %p203 = scmp.eq.s32.totalorder %s202, 0
      %s205 = sadd.s32 %s204, 1
      %s206 = scalar_select %p203, %s204, %s205
      %p209 = pneg %p203
      %p210 = scmp.eq.s32.totalorder %s26, 7
      %p211 = por %p209, %p210
      %p212 = scmp.ne.s32.totalorder %s204, %s207
      %p213 = scmp.eq.s32.totalorder %s26, 0
      %p214 = por %p212, %p213
      %p215 = scmp.ne.s32.totalorder %s204, %s207
      %p216 = scmp.eq.s32.totalorder %s31, 7
      %p217 = por %p215, %p216
      %p218 = scmp.ne.s32.totalorder %s207, %s208
      %p219 = scmp.eq.s32.totalorder %s31, 0
      %p220 = por %p218, %p219
      %p221 = scmp.ne.s32.totalorder %s207, %s208
      %p222 = scmp.eq.s32.totalorder %s32, 7
      %p223 = por %p221, %p222
      %p225 = scmp.ne.s32.totalorder %s208, %s224
      %p226 = scmp.eq.s32.totalorder %s32, 0
      %p227 = por %p225, %p226
      %s228 = ssub.s32 %s33, %s45
      %s229 = ssub.s32 %s34, %s41
      %s230 = sor.u32 %s228, %s229
      %p231 = scmp.eq.s32.totalorder %s230, 0
      %s233 = sadd.s32 %s232, 1
      %s234 = scalar_select %p231, %s232, %s233
      %p237 = pneg %p231
      %p238 = scmp.eq.s32.totalorder %s26, 7
      %p239 = por %p237, %p238
      %p240 = scmp.ne.s32.totalorder %s232, %s235
      %p241 = scmp.eq.s32.totalorder %s26, 0
      %p242 = por %p240, %p241
      %p243 = scmp.ne.s32.totalorder %s232, %s235
      %p244 = scmp.eq.s32.totalorder %s31, 7
      %p245 = por %p243, %p244
      %p246 = scmp.ne.s32.totalorder %s235, %s236
      %p247 = scmp.eq.s32.totalorder %s31, 0
      %p248 = por %p246, %p247
      %p249 = scmp.ne.s32.totalorder %s235, %s236
      %p250 = scmp.eq.s32.totalorder %s32, 7
      %p251 = por %p249, %p250
      %p253 = scmp.ne.s32.totalorder %s236, %s252
      %p254 = scmp.eq.s32.totalorder %s32, 0
      %p255 = por %p253, %p254
      %p256 = scmp.le.s32.totalorder 1, %s26
      %p257 = scmp.lt.s32.totalorder %s26, 9
      %p258 = pnand %p256, %p257
      %p259 = pneg %p258
      // Predicated region
      $region9: #{tpu_custom_call.1} parent=5 // pred_check
        _
      $region10: #{tpu_custom_call.1} parent=5 // pred_check_branch
        %261 = sbr.rel (%p258) target = $region12
      $region11: #{tpu_custom_call.1} parent=5 // pred_region
        %s262 = ssub.s32 %s26, 1
        // Predicated region
        $region13: #{tpu_custom_call.1} parent=11 // pred_check
          %p263 = pneg %p87
        $region14: #{tpu_custom_call.1} parent=11 // pred_check_branch
          %265 = sbr.rel (%p263) target = $region16
        $region15: #{tpu_custom_call.1} parent=11 // pred_region
          %s267 = ssub.s32 2048, 2048
          %268 = vsyncadd [#allocation8], %s267
          %s269 = sshll.u32 [#allocation7], 4
          %s270 = int_to_ptr.vmem [resolvable:$true] %s269
          %275 = dma.hbm_to_vmem [thread:$0]  %s1, 2048, %s270, [#allocation8], 128, 128, 8
        $region16: #{tpu_custom_call.1} parent=11 // pred_fallthru
          _
        // Predicated region
        $region17: #{tpu_custom_call.1} parent=11 // pred_check
          %p276 = pneg %p108
        $region18: #{tpu_custom_call.1} parent=11 // pred_check_branch
          %278 = sbr.rel (%p276) target = $region20
        $region19: #{tpu_custom_call.1} parent=11 // pred_region
          %s280 = ssub.s32 2048, 2048
          %281 = vsyncadd [#allocation8], %s280
          %s282 = sshll.u32 [#allocation9], 4
          %s283 = int_to_ptr.vmem [resolvable:$true] %s282
          %288 = dma.hbm_to_vmem [thread:$0]  %s2, 2048, %s283, [#allocation8], 128, 128, 8
        $region20: #{tpu_custom_call.1} parent=11 // pred_fallthru
          _
        // Predicated region
        $region21: #{tpu_custom_call.1} parent=11 // pred_check
          %p289 = pneg %p129
        $region22: #{tpu_custom_call.1} parent=11 // pred_check_branch
          %291 = sbr.rel (%p289) target = $region24
        $region23: #{tpu_custom_call.1} parent=11 // pred_region
          %s293 = ssub.s32 2048, 2048
          %294 = vsyncadd [#allocation11], %s293
          %s295 = sshll.u32 [#allocation10], 4
          %s296 = int_to_ptr.vmem [resolvable:$true] %s295
          %301 = dma.hbm_to_vmem [thread:$0]  %s3, 2048, %s296, [#allocation11], 128, 128, 8
        $region24: #{tpu_custom_call.1} parent=11 // pred_fallthru
          _
        // Predicated region
        $region25: #{tpu_custom_call.1} parent=11 // pred_check
          %p302 = pneg %p150
        $region26: #{tpu_custom_call.1} parent=11 // pred_check_branch
          %304 = sbr.rel (%p302) target = $region28
        $region27: #{tpu_custom_call.1} parent=11 // pred_region
          %s306 = ssub.s32 2048, 2048
          %307 = vsyncadd [#allocation11], %s306
          %s308 = sshll.u32 [#allocation12], 4
          %s309 = int_to_ptr.vmem [resolvable:$true] %s308
          %314 = dma.hbm_to_vmem [thread:$0]  %s4, 2048, %s309, [#allocation11], 128, 128, 8
        $region28: #{tpu_custom_call.1} parent=11 // pred_fallthru
          _
        // Predicated region
        $region29: #{tpu_custom_call.1} parent=11 // pred_check
          %p315 = pneg %p171
        $region30: #{tpu_custom_call.1} parent=11 // pred_check_branch
          %317 = sbr.rel (%p315) target = $region32
        $region31: #{tpu_custom_call.1} parent=11 // pred_region
          _
        $region32: #{tpu_custom_call.1} parent=11 // pred_fallthru
          _
        // Predicated region
        $region33: #{tpu_custom_call.1} parent=11 // pred_check
          %p318 = pneg %p192
        $region34: #{tpu_custom_call.1} parent=11 // pred_check_branch
          %320 = sbr.rel (%p318) target = $region36
        $region35: #{tpu_custom_call.1} parent=11 // pred_region
          _
        $region36: #{tpu_custom_call.1} parent=11 // pred_fallthru
          _
      $region12: #{tpu_custom_call.1} parent=5 // pred_fallthru
        _
      %p321 = scmp.lt.s32.totalorder %s26, 8
      // Predicated region
      $region37: #{tpu_custom_call.1} parent=5 // pred_check
        %p322 = pneg %p321
      $region38: #{tpu_custom_call.1} parent=5 // pred_check_branch
        %324 = sbr.rel (%p322) target = $region40
      $region39: #{tpu_custom_call.1} parent=5 // pred_region
        // Predicated region
        $region41: #{tpu_custom_call.1} parent=39 // pred_check
          %p325 = pneg %p60
        $region42: #{tpu_custom_call.1} parent=39 // pred_check_branch
          %327 = sbr.rel (%p325) target = $region44
        $region43: #{tpu_custom_call.1} parent=39 // pred_region
          %s328 = sand.u32 %s50, 1
          %s329 = scalar_lea.sflag [#allocation5], %s328
          %s330 = sand.u32 %s50, 1
          %s331 = smul.addr %s330, 8
          %s332 = scalar_lea.vmem [#allocation4], %s331
          %s334 = ssub.s32 128, 128
          %335 = vsyncadd %s329, %s334
          %s336 = smul.addr %s33, 4
          %s337 = sadd.s32 %s34, %s336
          %s338 = smul.addr %s337, 128
          %s339 = scalar_lea.hbm %s0, %s338
          %s341 = sshll.u32 %s332, 4
          %s342 = int_to_ptr.vmem [resolvable:$true] %s341
          %344 = dma.hbm_to_vmem [thread:$0]  %s339, 128, %s342, %s329
        $region44: #{tpu_custom_call.1} parent=39 // pred_fallthru
          _
      $region40: #{tpu_custom_call.1} parent=5 // pred_fallthru
        _
      %p345 = scmp.le.s32.totalorder 1, %s26
      %p346 = scmp.lt.s32.totalorder %s26, 9
      %p347 = pnand %p345, %p346
      %p348 = pneg %p347
      // Predicated region
      $region45: #{tpu_custom_call.1} parent=5 // pred_check
        _
      $region46: #{tpu_custom_call.1} parent=5 // pred_check_branch
        %350 = sbr.rel (%p347) target = $region48
      $region47: #{tpu_custom_call.1} parent=5 // pred_region
        %s351 = ssub.s32 %s26, 1
        %s352 = sand.u32 %s53, 1
        %s353 = scalar_lea.sflag [#allocation5], %s352
        %s354 = sand.u32 %s53, 1
        %s355 = smul.addr %s354, 8
        %s356 = scalar_lea.vmem [#allocation4], %s355
        // Predicated region
        $region49: #{tpu_custom_call.1} parent=47 // pred_check
          %p357 = pneg %p66
        $region50: #{tpu_custom_call.1} parent=47 // pred_check_branch
          %359 = sbr.rel (%p357) target = $region52
        $region51: #{tpu_custom_call.1} parent=47 // pred_region
          %360 = dma.done %s353, 128
        $region52: #{tpu_custom_call.1} parent=47 // pred_fallthru
          _
        // Predicated region
        $region53: #{tpu_custom_call.1} parent=47 // pred_check
          %p361 = pneg %p87
        $region54: #{tpu_custom_call.1} parent=47 // pred_check_branch
          %363 = sbr.rel (%p361) target = $region56
        $region55: #{tpu_custom_call.1} parent=47 // pred_region
          %364 = dma.done [#allocation8], 2048
        $region56: #{tpu_custom_call.1} parent=47 // pred_fallthru
          _
        // Predicated region
        $region57: #{tpu_custom_call.1} parent=47 // pred_check
          %p365 = pneg %p108
        $region58: #{tpu_custom_call.1} parent=47 // pred_check_branch
          %367 = sbr.rel (%p365) target = $region60
        $region59: #{tpu_custom_call.1} parent=47 // pred_region
          %368 = dma.done [#allocation8], 2048
        $region60: #{tpu_custom_call.1} parent=47 // pred_fallthru
          _
        // Predicated region
        $region61: #{tpu_custom_call.1} parent=47 // pred_check
          %p369 = pneg %p129
        $region62: #{tpu_custom_call.1} parent=47 // pred_check_branch
          %371 = sbr.rel (%p369) target = $region64
        $region63: #{tpu_custom_call.1} parent=47 // pred_region
          %372 = dma.done [#allocation11], 2048
        $region64: #{tpu_custom_call.1} parent=47 // pred_fallthru
          _
        // Predicated region
        $region65: #{tpu_custom_call.1} parent=47 // pred_check
          %p373 = pneg %p150
        $region66: #{tpu_custom_call.1} parent=47 // pred_check_branch
          %375 = sbr.rel (%p373) target = $region68
        $region67: #{tpu_custom_call.1} parent=47 // pred_region
          %376 = dma.done [#allocation11], 2048
        $region68: #{tpu_custom_call.1} parent=47 // pred_fallthru
          _
        %s377 = sand.u32 %s53, 1
        %s378 = scalar_lea.sflag [#allocation5], %s377
        %s379 = sand.u32 %s53, 1
        %s380 = smul.addr %s379, 8
        %s381 = scalar_lea.vmem [#allocation4], %s380
        %p382 = pneg %p66
        %p383 = pneg %p63
        %p384 = pneg %p87
        %p385 = pneg %p84
        %p386 = pneg %p108
        %p387 = pneg %p105
        %p388 = pneg %p129
        %p389 = pneg %p126
        %p390 = pneg %p150
        %p391 = pneg %p147
        %p392 = pneg %p171
        %p393 = pneg %p168
        %p394 = pneg %p192
        %p395 = pneg %p189
        %p396 = pneg %p220
        %p397 = pneg %p217
        %s398 = sand.u32 %s207, 1
        %s399 = scalar_lea.sflag [#allocation6], %s398
        %s400 = sand.u32 %s207, 1
        %s401 = smul.addr %s400, 8
        %s402 = scalar_lea.vmem [#allocation13], %s401
        %p403 = pneg %p248
        %p404 = pneg %p245
        %s405 = sand.u32 %s235, 1
        %s406 = scalar_lea.sflag [#allocation15], %s405
        %s407 = sand.u32 %s235, 1
        %s408 = smul.addr %s407, 8
        %s409 = scalar_lea.vmem [#allocation14], %s408
        %p410 = scmp.eq.s32.totalorder %s36, 0
        // Predicated region
        $region69: #{tpu_custom_call.1} parent=47 // pred_check
          %p411 = pneg %p410
        $region70: #{tpu_custom_call.1} parent=47 // pred_check_branch
          %413 = sbr.rel (%p411) target = $region72
        $region71: #{tpu_custom_call.1} parent=47 // pred_region
          %v414 = vlaneseq
          %v415 = vshrl.u32 %v414, 7
          %v416 = vlaneseq
          %v417 = vand.u32 %v416, 127
          %vm418 = vcmp.le.s32.totalorder %v417, %v415
          %v419 = vsel %vm418, 1.0, 0.0
          %vm420 = vcmask 64512
          %421 = vst.msk [vmem:[#allocation2] sm:$0xff] %vm420, %v419
          %422 = vst [vmem:[#allocation3] sm:$0x1] 0.0
        $region72: #{tpu_custom_call.1} parent=47 // pred_fallthru
          _
        %v423 = vld [vmem:[%s356] sm:$0xff]
        %v424 = vld [vmem:[#allocation2] sm:$0xff]
        %v425 = vld [vmem:[#allocation3] sm:$0x1]
        %v427 = vlaneseq
        %v428 = vshrl.u32 %v427, 7
        %v429 = vsub.s32 0, %v428
        %v430 = vrot.slane %v425, %v429
        %vm432 = vcmask 64512
        %v434 = vsel %vm432, %v424, 0
        %436 = vmatprep.subr.mxu0 0.0
        %437 = vmatpush1.msra.mxu0 %v423
        %438 = vmatprep.subr.mxu0 0.0
        %439 = vmatpush1.msra.mxu0 0.0
        %440 = vmatprep.subr.mxu0 0.0
        %441 = vmatpush1.msra.mxu0 0.0
        %442 = vmatprep.subr.mxu0 0.0
        %443 = vmatpush1.msra.mxu0 0.0
        %444 = vmatprep.subr.mxu0 0.0
        %445 = vmatpush1.msra.mxu0 0.0
        %446 = vmatprep.subr.mxu0 0.0
        %447 = vmatpush1.msra.mxu0 0.0
        %448 = vmatprep.subr.mxu0 0.0
        %449 = vmatpush1.msra.mxu0 0.0
        %450 = vmatprep.subr.mxu0 0.0
        %451 = vmatpush1.msra.mxu0 0.0
        %452 = vmatprep.subr.mxu0 0.0
        %453 = vmatpush1.msra.mxu0 0.0
        %454 = vmatprep.subr.mxu0 0.0
        %455 = vmatpush1.msra.mxu0 0.0
        %456 = vmatprep.subr.mxu0 0.0
        %457 = vmatpush1.msra.mxu0 0.0
        %458 = vmatprep.subr.mxu0 0.0
        %459 = vmatpush1.msra.mxu0 0.0
        %460 = vmatprep.subr.mxu0 0.0
        %461 = vmatpush1.msra.mxu0 0.0
        %462 = vmatprep.subr.mxu0 0.0
        %463 = vmatpush1.msra.mxu0 0.0
        %464 = vmatprep.subr.mxu0 0.0
        %465 = vmatpush1.msra.mxu0 0.0
        %466 = vmatprep.subr.mxu0 0.0
        %467 = vmatpush1.msra.mxu0 0.0
        %468 = vmatprep.subr.mxu0 0.0
        %469 = vmatpush1.msra.mxu0 0.0
        %470 = vmatprep.subr.mxu0 0.0
        %471 = vmatpush1.msra.mxu0 0.0
        %472 = vmatprep.subr.mxu0 0.0
        %473 = vmatpush1.msra.mxu0 0.0
        %474 = vmatprep.subr.mxu0 0.0
        %475 = vmatpush1.msra.mxu0 0.0
        %476 = vmatprep.subr.mxu0 0.0
        %477 = vmatpush1.msra.mxu0 0.0
        %478 = vmatprep.subr.mxu0 0.0
        %479 = vmatpush1.msra.mxu0 0.0
        %480 = vmatprep.subr.mxu0 0.0
        %481 = vmatpush1.msra.mxu0 0.0
        %482 = vmatprep.subr.mxu0 0.0
        %483 = vmatpush1.msra.mxu0 0.0
        %484 = vmatprep.subr.mxu0 0.0
        %485 = vmatpush1.msra.mxu0 0.0
        %486 = vmatprep.subr.mxu0 0.0
        %487 = vmatpush1.msra.mxu0 0.0
        %488 = vmatprep.subr.mxu0 0.0
        %489 = vmatpush1.msra.mxu0 0.0
        %490 = vmatprep.subr.mxu0 0.0
        %491 = vmatpush1.msra.mxu0 0.0
        %492 = vmatprep.subr.mxu0 0.0
        %493 = vmatpush1.msra.mxu0 0.0
        %494 = vmatprep.subr.mxu0 0.0
        %495 = vmatpush1.msra.mxu0 0.0
        %496 = vmatprep.subr.mxu0 0.0
        %497 = vmatpush1.msra.mxu0 0.0
        %498 = vmatprep.subr.mxu0 0.0
        %499 = vmatpush1.msra.mxu0 0.0
        %500 = vmatprep.mubr.f32.mxu0 0.0
        %501 = vmatmul.mubr.f32.gmra.mrb[0].mxu0 %v434
        %v502 = vpop.f32.mrb[0].mxu0
        %v503 = vadd.f32 %v430, %v502
        %v504 = vpop.f32.mrb[0].mxu0
        %505 = vdwg.mxu0
        %506 = vst [vmem:[#allocation3 - $0x7] sm:$0x80] %v503
        %v507 = vlaneseq
        %v508 = vshrl.u32 %v507, 7
        %s509 = smul.u32 %s36, 8
        %v510 = vstv %s509
        %v511 = vadd.s32 %v508, %v510
        %v512 = vadd.s32 %v511, 1
        %v513 = vcvt.s32.f32 %v512
        %v514 = vrcp.pop %v513
        %v515 = vmul.f32 1.0, %v514
        %v516 = vmul.f32 %v503, %v515
        %v517 = vld [vmem:[#allocation7] sm:$0xff]
        %v518 = vld [vmem:[#allocation7 + $0x8] sm:$0xff]
        %v519 = vld [vmem:[#allocation7 + $0x10] sm:$0xff]
        %v520 = vld [vmem:[#allocation7 + $0x18] sm:$0xff]
        %v521 = vld [vmem:[#allocation7 + $0x20] sm:$0xff]
        %v522 = vld [vmem:[#allocation7 + $0x28] sm:$0xff]
        %v523 = vld [vmem:[#allocation7 + $0x30] sm:$0xff]
        %v524 = vld [vmem:[#allocation7 + $0x38] sm:$0xff]
        %v525 = vld [vmem:[#allocation7 + $0x40] sm:$0xff]
        %v526 = vld [vmem:[#allocation7 + $0x48] sm:$0xff]
        %v527 = vld [vmem:[#allocation7 + $0x50] sm:$0xff]
        %v528 = vld [vmem:[#allocation7 + $0x58] sm:$0xff]
        %v529 = vld [vmem:[#allocation7 + $0x60] sm:$0xff]
        %v530 = vld [vmem:[#allocation7 + $0x68] sm:$0xff]
        %v531 = vld [vmem:[#allocation7 + $0x70] sm:$0xff]
        %v532 = vld [vmem:[#allocation7 + $0x78] sm:$0xff]
        %v533 = vld [vmem:[#allocation9] sm:$0xff]
        %v534 = vld [vmem:[#allocation9 + $0x8] sm:$0xff]
        %v535 = vld [vmem:[#allocation9 + $0x10] sm:$0xff]
        %v536 = vld [vmem:[#allocation9 + $0x18] sm:$0xff]
        %v537 = vld [vmem:[#allocation9 + $0x20] sm:$0xff]
        %v538 = vld [vmem:[#allocation9 + $0x28] sm:$0xff]
        %v539 = vld [vmem:[#allocation9 + $0x30] sm:$0xff]
        %v540 = vld [vmem:[#allocation9 + $0x38] sm:$0xff]
        %v541 = vld [vmem:[#allocation9 + $0x40] sm:$0xff]
        %v542 = vld [vmem:[#allocation9 + $0x48] sm:$0xff]
        %v543 = vld [vmem:[#allocation9 + $0x50] sm:$0xff]
        %v544 = vld [vmem:[#allocation9 + $0x58] sm:$0xff]
        %v545 = vld [vmem:[#allocation9 + $0x60] sm:$0xff]
        %v546 = vld [vmem:[#allocation9 + $0x68] sm:$0xff]
        %v547 = vld [vmem:[#allocation9 + $0x70] sm:$0xff]
        %v548 = vld [vmem:[#allocation9 + $0x78] sm:$0xff]
        %549 = vmatprep.subr.mxu0 0.0
        %550 = vmatpush1.msra.mxu0 %v533
        %551 = vmatprep.subr.mxu0 0.0
        %552 = vmatpush1.msra.mxu0 %v534
        %553 = vmatprep.subr.mxu0 0.0
        %554 = vmatpush1.msra.mxu0 %v535
        %555 = vmatprep.subr.mxu0 0.0
        %556 = vmatpush1.msra.mxu0 %v536
        %557 = vmatprep.subr.mxu0 0.0
        %558 = vmatpush1.msra.mxu0 %v537
        %559 = vmatprep.subr.mxu0 0.0
        %560 = vmatpush1.msra.mxu0 %v538
        %561 = vmatprep.subr.mxu0 0.0
        %562 = vmatpush1.msra.mxu0 %v539
        %563 = vmatprep.subr.mxu0 0.0
        %564 = vmatpush1.msra.mxu0 %v540
        %565 = vmatprep.subr.mxu0 0.0
        %566 = vmatpush1.msra.mxu0 %v541
        %567 = vmatprep.subr.mxu0 0.0
        %568 = vmatpush1.msra.mxu0 %v542
        %569 = vmatprep.subr.mxu0 0.0
        %570 = vmatpush1.msra.mxu0 %v543
        %571 = vmatprep.subr.mxu0 0.0
        %572 = vmatpush1.msra.mxu0 %v544
        %573 = vmatprep.subr.mxu0 0.0
        %574 = vmatpush1.msra.mxu0 %v545
        %575 = vmatprep.subr.mxu0 0.0
        %576 = vmatpush1.msra.mxu0 %v546
        %577 = vmatprep.subr.mxu0 0.0
        %578 = vmatpush1.msra.mxu0 %v547
        %579 = vmatprep.subr.mxu0 0.0
        %580 = vmatpush1.msra.mxu0 %v548
        %581 = vmatprep.subr.mxu0 0.0
        %582 = vmatpush1.msra.mxu0 0.0
        %583 = vmatprep.subr.mxu0 0.0
        %584 = vmatpush1.msra.mxu0 0.0
        %585 = vmatprep.subr.mxu0 0.0
        %586 = vmatpush1.msra.mxu0 0.0
        %587 = vmatprep.subr.mxu0 0.0
        %588 = vmatpush1.msra.mxu0 0.0
        %589 = vmatprep.subr.mxu0 0.0
        %590 = vmatpush1.msra.mxu0 0.0
        %591 = vmatprep.subr.mxu0 0.0
        %592 = vmatpush1.msra.mxu0 0.0
        %593 = vmatprep.subr.mxu0 0.0
        %594 = vmatpush1.msra.mxu0 0.0
        %595 = vmatprep.subr.mxu0 0.0
        %596 = vmatpush1.msra.mxu0 0.0
        %597 = vmatprep.subr.mxu0 0.0
        %598 = vmatpush1.msra.mxu0 0.0
        %599 = vmatprep.subr.mxu0 0.0
        %600 = vmatpush1.msra.mxu0 0.0
        %601 = vmatprep.subr.mxu0 0.0
        %602 = vmatpush1.msra.mxu0 0.0
        %603 = vmatprep.subr.mxu0 0.0
        %604 = vmatpush1.msra.mxu0 0.0
        %605 = vmatprep.subr.mxu0 0.0
        %606 = vmatpush1.msra.mxu0 0.0
        %607 = vmatprep.subr.mxu0 0.0
        %608 = vmatpush1.msra.mxu0 0.0
        %609 = vmatprep.subr.mxu0 0.0
        %610 = vmatpush1.msra.mxu0 0.0
        %611 = vmatprep.subr.mxu0 0.0
        %612 = vmatpush1.msra.mxu0 0.0
        %613 = vmatprep.mubr.f32.mxu0 0.0
        %614 = vmatmul.mubr.f32.gmra.mrb[0].mxu0 %v516
        %v615 = vpop.f32.mrb[0].mxu0
        %v616 = vadd.f32 0.0, %v615
        %v617 = vpop.f32.mrb[0].mxu0
        %618 = vdwg.mxu0
        %619 = vmatprep.subr.mxu0 0.0
        %620 = vmatpush1.msra.mxu0 %v517
        %621 = vmatprep.subr.mxu0 0.0
        %622 = vmatpush1.msra.mxu0 %v518
        %623 = vmatprep.subr.mxu0 0.0
        %624 = vmatpush1.msra.mxu0 %v519
        %625 = vmatprep.subr.mxu0 0.0
        %626 = vmatpush1.msra.mxu0 %v520
        %627 = vmatprep.subr.mxu0 0.0
        %628 = vmatpush1.msra.mxu0 %v521
        %629 = vmatprep.subr.mxu0 0.0
        %630 = vmatpush1.msra.mxu0 %v522
        %631 = vmatprep.subr.mxu0 0.0
        %632 = vmatpush1.msra.mxu0 %v523
        %633 = vmatprep.subr.mxu0 0.0
        %634 = vmatpush1.msra.mxu0 %v524
        %635 = vmatprep.subr.mxu0 0.0
        %636 = vmatpush1.msra.mxu0 %v525
        %637 = vmatprep.subr.mxu0 0.0
        %638 = vmatpush1.msra.mxu0 %v526
        %639 = vmatprep.subr.mxu0 0.0
        %640 = vmatpush1.msra.mxu0 %v527
        %641 = vmatprep.subr.mxu0 0.0
        %642 = vmatpush1.msra.mxu0 %v528
        %643 = vmatprep.subr.mxu0 0.0
        %644 = vmatpush1.msra.mxu0 %v529
        %645 = vmatprep.subr.mxu0 0.0
        %646 = vmatpush1.msra.mxu0 %v530
        %647 = vmatprep.subr.mxu0 0.0
        %648 = vmatpush1.msra.mxu0 %v531
        %649 = vmatprep.subr.mxu0 0.0
        %650 = vmatpush1.msra.mxu0 %v532
        %651 = vmatprep.subr.mxu0 0.0
        %652 = vmatpush1.msra.mxu0 0.0
        %653 = vmatprep.subr.mxu0 0.0
        %654 = vmatpush1.msra.mxu0 0.0
        %655 = vmatprep.subr.mxu0 0.0
        %656 = vmatpush1.msra.mxu0 0.0
        %657 = vmatprep.subr.mxu0 0.0
        %658 = vmatpush1.msra.mxu0 0.0
        %659 = vmatprep.subr.mxu0 0.0
        %660 = vmatpush1.msra.mxu0 0.0
        %661 = vmatprep.subr.mxu0 0.0
        %662 = vmatpush1.msra.mxu0 0.0
        %663 = vmatprep.subr.mxu0 0.0
        %664 = vmatpush1.msra.mxu0 0.0
        %665 = vmatprep.subr.mxu0 0.0
        %666 = vmatpush1.msra.mxu0 0.0
        %667 = vmatprep.subr.mxu0 0.0
        %668 = vmatpush1.msra.mxu0 0.0
        %669 = vmatprep.subr.mxu0 0.0
        %670 = vmatpush1.msra.mxu0 0.0
        %671 = vmatprep.subr.mxu0 0.0
        %672 = vmatpush1.msra.mxu0 0.0
        %673 = vmatprep.subr.mxu0 0.0
        %674 = vmatpush1.msra.mxu0 0.0
        %675 = vmatprep.subr.mxu0 0.0
        %676 = vmatpush1.msra.mxu0 0.0
        %677 = vmatprep.subr.mxu0 0.0
        %678 = vmatpush1.msra.mxu0 0.0
        %679 = vmatprep.subr.mxu0 0.0
        %680 = vmatpush1.msra.mxu0 0.0
        %681 = vmatprep.subr.mxu0 0.0
        %682 = vmatpush1.msra.mxu0 0.0
        %683 = vmatprep.mubr.f32.mxu0 0.0
        %684 = vmatmul.mubr.f32.gmra.mrb[0].mxu0 %v423
        %v685 = vpop.f32.mrb[0].mxu0
        %v686 = vadd.f32 %v616, %v685
        %v687 = vpop.f32.mrb[0].mxu0
        %688 = vdwg.mxu0
        %v689 = vld [vmem:[%s5] sm:$0x1]
        %v691 = vlaneseq
        %v692 = vshrl.u32 %v691, 7
        %v693 = vsub.s32 0, %v692
        %v694 = vrot.slane %v689, %v693
        %v696 = vadd.f32 %v686, %v694
        %v697 = vld [vmem:[#allocation10] sm:$0xff]
        %v698 = vld [vmem:[#allocation10 + $0x8] sm:$0xff]
        %v699 = vld [vmem:[#allocation10 + $0x10] sm:$0xff]
        %v700 = vld [vmem:[#allocation10 + $0x18] sm:$0xff]
        %v701 = vld [vmem:[#allocation10 + $0x20] sm:$0xff]
        %v702 = vld [vmem:[#allocation10 + $0x28] sm:$0xff]
        %v703 = vld [vmem:[#allocation10 + $0x30] sm:$0xff]
        %v704 = vld [vmem:[#allocation10 + $0x38] sm:$0xff]
        %v705 = vld [vmem:[#allocation10 + $0x40] sm:$0xff]
        %v706 = vld [vmem:[#allocation10 + $0x48] sm:$0xff]
        %v707 = vld [vmem:[#allocation10 + $0x50] sm:$0xff]
        %v708 = vld [vmem:[#allocation10 + $0x58] sm:$0xff]
        %v709 = vld [vmem:[#allocation10 + $0x60] sm:$0xff]
        %v710 = vld [vmem:[#allocation10 + $0x68] sm:$0xff]
        %v711 = vld [vmem:[#allocation10 + $0x70] sm:$0xff]
        %v712 = vld [vmem:[#allocation10 + $0x78] sm:$0xff]
        %v713 = vld [vmem:[#allocation12] sm:$0xff]
        %v714 = vld [vmem:[#allocation12 + $0x8] sm:$0xff]
        %v715 = vld [vmem:[#allocation12 + $0x10] sm:$0xff]
        %v716 = vld [vmem:[#allocation12 + $0x18] sm:$0xff]
        %v717 = vld [vmem:[#allocation12 + $0x20] sm:$0xff]
        %v718 = vld [vmem:[#allocation12 + $0x28] sm:$0xff]
        %v719 = vld [vmem:[#allocation12 + $0x30] sm:$0xff]
        %v720 = vld [vmem:[#allocation12 + $0x38] sm:$0xff]
        %v721 = vld [vmem:[#allocation12 + $0x40] sm:$0xff]
        %v722 = vld [vmem:[#allocation12 + $0x48] sm:$0xff]
        %v723 = vld [vmem:[#allocation12 + $0x50] sm:$0xff]
        %v724 = vld [vmem:[#allocation12 + $0x58] sm:$0xff]
        %v725 = vld [vmem:[#allocation12 + $0x60] sm:$0xff]
        %v726 = vld [vmem:[#allocation12 + $0x68] sm:$0xff]
        %v727 = vld [vmem:[#allocation12 + $0x70] sm:$0xff]
        %v728 = vld [vmem:[#allocation12 + $0x78] sm:$0xff]
        %729 = vmatprep.subr.mxu0 0.0
        %730 = vmatpush1.msra.mxu0 %v713
        %731 = vmatprep.subr.mxu0 0.0
        %732 = vmatpush1.msra.mxu0 %v714
        %733 = vmatprep.subr.mxu0 0.0
        %734 = vmatpush1.msra.mxu0 %v715
        %735 = vmatprep.subr.mxu0 0.0
        %736 = vmatpush1.msra.mxu0 %v716
        %737 = vmatprep.subr.mxu0 0.0
        %738 = vmatpush1.msra.mxu0 %v717
        %739 = vmatprep.subr.mxu0 0.0
        %740 = vmatpush1.msra.mxu0 %v718
        %741 = vmatprep.subr.mxu0 0.0
        %742 = vmatpush1.msra.mxu0 %v719
        %743 = vmatprep.subr.mxu0 0.0
        %744 = vmatpush1.msra.mxu0 %v720
        %745 = vmatprep.subr.mxu0 0.0
        %746 = vmatpush1.msra.mxu0 %v721
        %747 = vmatprep.subr.mxu0 0.0
        %748 = vmatpush1.msra.mxu0 %v722
        %749 = vmatprep.subr.mxu0 0.0
        %750 = vmatpush1.msra.mxu0 %v723
        %751 = vmatprep.subr.mxu0 0.0
        %752 = vmatpush1.msra.mxu0 %v724
        %753 = vmatprep.subr.mxu0 0.0
        %754 = vmatpush1.msra.mxu0 %v725
        %755 = vmatprep.subr.mxu0 0.0
        %756 = vmatpush1.msra.mxu0 %v726
        %757 = vmatprep.subr.mxu0 0.0
        %758 = vmatpush1.msra.mxu0 %v727
        %759 = vmatprep.subr.mxu0 0.0
        %760 = vmatpush1.msra.mxu0 %v728
        %761 = vmatprep.subr.mxu0 0.0
        %762 = vmatpush1.msra.mxu0 0.0
        %763 = vmatprep.subr.mxu0 0.0
        %764 = vmatpush1.msra.mxu0 0.0
        %765 = vmatprep.subr.mxu0 0.0
        %766 = vmatpush1.msra.mxu0 0.0
        %767 = vmatprep.subr.mxu0 0.0
        %768 = vmatpush1.msra.mxu0 0.0
        %769 = vmatprep.subr.mxu0 0.0
        %770 = vmatpush1.msra.mxu0 0.0
        %771 = vmatprep.subr.mxu0 0.0
        %772 = vmatpush1.msra.mxu0 0.0
        %773 = vmatprep.subr.mxu0 0.0
        %774 = vmatpush1.msra.mxu0 0.0
        %775 = vmatprep.subr.mxu0 0.0
        %776 = vmatpush1.msra.mxu0 0.0
        %777 = vmatprep.subr.mxu0 0.0
        %778 = vmatpush1.msra.mxu0 0.0
        %779 = vmatprep.subr.mxu0 0.0
        %780 = vmatpush1.msra.mxu0 0.0
        %781 = vmatprep.subr.mxu0 0.0
        %782 = vmatpush1.msra.mxu0 0.0
        %783 = vmatprep.subr.mxu0 0.0
        %784 = vmatpush1.msra.mxu0 0.0
        %785 = vmatprep.subr.mxu0 0.0
        %786 = vmatpush1.msra.mxu0 0.0
        %787 = vmatprep.subr.mxu0 0.0
        %788 = vmatpush1.msra.mxu0 0.0
        %789 = vmatprep.subr.mxu0 0.0
        %790 = vmatpush1.msra.mxu0 0.0
        %791 = vmatprep.subr.mxu0 0.0
        %792 = vmatpush1.msra.mxu0 0.0
        %793 = vmatprep.mubr.f32.mxu0 0.0
        %794 = vmatmul.mubr.f32.gmra.mrb[0].mxu0 %v516
        %v795 = vpop.f32.mrb[0].mxu0
        %v796 = vadd.f32 0.0, %v795
        %v797 = vpop.f32.mrb[0].mxu0
        %798 = vdwg.mxu0
        %799 = vmatprep.subr.mxu0 0.0
        %800 = vmatpush1.msra.mxu0 %v697
        %801 = vmatprep.subr.mxu0 0.0
        %802 = vmatpush1.msra.mxu0 %v698
        %803 = vmatprep.subr.mxu0 0.0
        %804 = vmatpush1.msra.mxu0 %v699
        %805 = vmatprep.subr.mxu0 0.0
        %806 = vmatpush1.msra.mxu0 %v700
        %807 = vmatprep.subr.mxu0 0.0
        %808 = vmatpush1.msra.mxu0 %v701
        %809 = vmatprep.subr.mxu0 0.0
        %810 = vmatpush1.msra.mxu0 %v702
        %811 = vmatprep.subr.mxu0 0.0
        %812 = vmatpush1.msra.mxu0 %v703
        %813 = vmatprep.subr.mxu0 0.0
        %814 = vmatpush1.msra.mxu0 %v704
        %815 = vmatprep.subr.mxu0 0.0
        %816 = vmatpush1.msra.mxu0 %v705
        %817 = vmatprep.subr.mxu0 0.0
        %818 = vmatpush1.msra.mxu0 %v706
        %819 = vmatprep.subr.mxu0 0.0
        %820 = vmatpush1.msra.mxu0 %v707
        %821 = vmatprep.subr.mxu0 0.0
        %822 = vmatpush1.msra.mxu0 %v708
        %823 = vmatprep.subr.mxu0 0.0
        %824 = vmatpush1.msra.mxu0 %v709
        %825 = vmatprep.subr.mxu0 0.0
        %826 = vmatpush1.msra.mxu0 %v710
        %827 = vmatprep.subr.mxu0 0.0
        %828 = vmatpush1.msra.mxu0 %v711
        %829 = vmatprep.subr.mxu0 0.0
        %830 = vmatpush1.msra.mxu0 %v712
        %831 = vmatprep.subr.mxu0 0.0
        %832 = vmatpush1.msra.mxu0 0.0
        %833 = vmatprep.subr.mxu0 0.0
        %834 = vmatpush1.msra.mxu0 0.0
        %835 = vmatprep.subr.mxu0 0.0
        %836 = vmatpush1.msra.mxu0 0.0
        %837 = vmatprep.subr.mxu0 0.0
        %838 = vmatpush1.msra.mxu0 0.0
        %839 = vmatprep.subr.mxu0 0.0
        %840 = vmatpush1.msra.mxu0 0.0
        %841 = vmatprep.subr.mxu0 0.0
        %842 = vmatpush1.msra.mxu0 0.0
        %843 = vmatprep.subr.mxu0 0.0
        %844 = vmatpush1.msra.mxu0 0.0
        %845 = vmatprep.subr.mxu0 0.0
        %846 = vmatpush1.msra.mxu0 0.0
        %847 = vmatprep.subr.mxu0 0.0
        %848 = vmatpush1.msra.mxu0 0.0
        %849 = vmatprep.subr.mxu0 0.0
        %850 = vmatpush1.msra.mxu0 0.0
        %851 = vmatprep.subr.mxu0 0.0
        %852 = vmatpush1.msra.mxu0 0.0
        %853 = vmatprep.subr.mxu0 0.0
        %854 = vmatpush1.msra.mxu0 0.0
        %855 = vmatprep.subr.mxu0 0.0
        %856 = vmatpush1.msra.mxu0 0.0
        %857 = vmatprep.subr.mxu0 0.0
        %858 = vmatpush1.msra.mxu0 0.0
        %859 = vmatprep.subr.mxu0 0.0
        %860 = vmatpush1.msra.mxu0 0.0
        %861 = vmatprep.subr.mxu0 0.0
        %862 = vmatpush1.msra.mxu0 0.0
        %863 = vmatprep.mubr.f32.mxu0 0.0
        %864 = vmatmul.mubr.f32.gmra.mrb[0].mxu0 %v423
        %v865 = vpop.f32.mrb[0].mxu0
        %v866 = vadd.f32 %v796, %v865
        %v867 = vpop.f32.mrb[0].mxu0
        %868 = vdwg.mxu0
        %v869 = vld [vmem:[%s6] sm:$0x1]
        %v871 = vlaneseq
        %v872 = vshrl.u32 %v871, 7
        %v873 = vsub.s32 0, %v872
        %v874 = vrot.slane %v869, %v873
        %v876 = vadd.f32 %v866, %v874
        %v877 = vxor.u32 %v696, 2147483648
        %v878 = vmul.f32 %v877, 1.442695
        %v879 = vpow.pop %v878
        %v880 = vadd.f32 %v879, 1.0
        %v881 = vrcp.pop %v880
        %v882 = vmul.f32 1.0, %v881
        %v883 = vmul.f32 %v882, %v423
        %v884 = vxor.u32 %v876, 2147483648
        %v885 = vmul.f32 %v884, 1.442695
        %v886 = vpow.pop %v885
        %v887 = vadd.f32 %v886, 1.0
        %v888 = vrcp.pop %v887
        %v889 = vmul.f32 1.0, %v888
        %v890 = vmul.f32 %v889, %v516
        %v891 = vadd.f32 %v883, %v890
        %892 = vst [vmem:[%s402] sm:$0xff] %v891
        %893 = vst [vmem:[%s409] sm:$0xff] %v516
        %s894 = sand.u32 %s207, 1
        %s895 = scalar_lea.sflag [#allocation6], %s894
        %s896 = sand.u32 %s207, 1
        %s897 = smul.addr %s896, 8
        %s898 = scalar_lea.vmem [#allocation13], %s897
        %s899 = sand.u32 %s235, 1
        %s900 = scalar_lea.sflag [#allocation15], %s899
        %s901 = sand.u32 %s235, 1
        %s902 = smul.addr %s901, 8
        %s903 = scalar_lea.vmem [#allocation14], %s902
        // Predicated region
        $region73: #{tpu_custom_call.1} parent=47 // pred_check
          %p904 = pneg %p217
        $region74: #{tpu_custom_call.1} parent=47 // pred_check_branch
          %906 = sbr.rel (%p904) target = $region76
        $region75: #{tpu_custom_call.1} parent=47 // pred_region
          %s908 = ssub.s32 128, 128
          %909 = vsyncadd %s895, %s908
          %s910 = smul.addr %s35, 4
          %s911 = sadd.s32 %s36, %s910
          %s912 = smul.addr %s911, 128
          %s913 = scalar_lea.hbm %s7, %s912
          %s915 = sshll.u32 %s898, 4
          %s916 = int_to_ptr.vmem [resolvable:$true] %s915
          %918 = dma.vmem_to_hbm [thread:$0]  %s916, 128, %s913, %s895
        $region76: #{tpu_custom_call.1} parent=47 // pred_fallthru
          _
        // Predicated region
        $region77: #{tpu_custom_call.1} parent=47 // pred_check
          %p919 = pneg %p245
        $region78: #{tpu_custom_call.1} parent=47 // pred_check_branch
          %921 = sbr.rel (%p919) target = $region80
        $region79: #{tpu_custom_call.1} parent=47 // pred_region
          %s923 = ssub.s32 128, 128
          %924 = vsyncadd %s900, %s923
          %s925 = smul.addr %s35, 4
          %s926 = sadd.s32 %s36, %s925
          %s927 = smul.addr %s926, 128
          %s928 = scalar_lea.hbm %s8, %s927
          %s930 = sshll.u32 %s903, 4
          %s931 = int_to_ptr.vmem [resolvable:$true] %s930
          %933 = dma.vmem_to_hbm [thread:$0]  %s931, 128, %s928, %s900
        $region80: #{tpu_custom_call.1} parent=47 // pred_fallthru
          _
      $region48: #{tpu_custom_call.1} parent=5 // pred_fallthru
        _
      %p934 = scmp.le.s32.totalorder 2, %s26
      // Predicated region
      $region81: #{tpu_custom_call.1} parent=5 // pred_check
        %p935 = pneg %p934
      $region82: #{tpu_custom_call.1} parent=5 // pred_check_branch
        %937 = sbr.rel (%p935) target = $region84
      $region83: #{tpu_custom_call.1} parent=5 // pred_region
        %s938 = ssub.s32 %s26, 2
        // Predicated region
        $region85: #{tpu_custom_call.1} parent=83 // pred_check
          %p939 = pneg %p223
        $region86: #{tpu_custom_call.1} parent=83 // pred_check_branch
          %941 = sbr.rel (%p939) target = $region88
        $region87: #{tpu_custom_call.1} parent=83 // pred_region
          %s942 = sand.u32 %s208, 1
          %s943 = scalar_lea.sflag [#allocation6], %s942
          %s944 = sand.u32 %s208, 1
          %s945 = smul.addr %s944, 8
          %s946 = scalar_lea.vmem [#allocation13], %s945
          %947 = dma.done %s943, 128
        $region88: #{tpu_custom_call.1} parent=83 // pred_fallthru
          _
        // Predicated region
        $region89: #{tpu_custom_call.1} parent=83 // pred_check
          %p948 = pneg %p251
        $region90: #{tpu_custom_call.1} parent=83 // pred_check_branch
          %950 = sbr.rel (%p948) target = $region92
        $region91: #{tpu_custom_call.1} parent=83 // pred_region
          %s951 = sand.u32 %s236, 1
          %s952 = scalar_lea.sflag [#allocation15], %s951
          %s953 = sand.u32 %s236, 1
          %s954 = smul.addr %s953, 8
          %s955 = scalar_lea.vmem [#allocation14], %s954
          %956 = dma.done %s952, 128
        $region92: #{tpu_custom_call.1} parent=83 // pred_fallthru
          _
      $region84: #{tpu_custom_call.1} parent=5 // pred_fallthru
        _
    $region6: #{tpu_custom_call.1} parent=1 // loop_footer
      %s30 = sadd.s32 1, %s26
    $region7: #{tpu_custom_call.1} parent=1 // loop_footer_branch
      %25 = sbr.rel target = $region3
    $region8: #{tpu_custom_call.1} parent=1 // loop_exit
      _
    %957 = vsyncpa [#allocation5], 1
    %s958 = scalar_lea.sflag [#allocation5], 1
    %959 = vsyncpa %s958, 1
    %960 = vsyncpa [#allocation8], 1
    %961 = vsyncpa [#allocation11], 1
    %962 = vsyncpa [#allocation6], 1
    %s963 = scalar_lea.sflag [#allocation6], 1
    %964 = vsyncpa %s963, 1
    %965 = vsyncpa [#allocation15], 1
    %s966 = scalar_lea.sflag [#allocation15], 1
    %967 = vsyncpa %s966, 1

</llo_original>
